<compile_context>
chip_gen: v7x
topology: tpu7x:2x2x1
jax: 0.10.0
libtpu: 0.0.40
codegen_flags: <defaults>
</compile_context>

<pallas_src>
import functools

import jax
import jax.numpy as jnp
from jax import lax
from jax.experimental import pallas as pl
from jax.experimental.pallas import tpu as pltpu

LANE = 128
EPS = 1e-5


def dqn_kernel(x_ref, vec_ref, w_ref, o_ref):
    # vec rows: 0=b1' (bn1-affine folded into linear1), 1=g2, 2=be2, 3=bf, 4..7 pad
    vec = vec_ref[...]                 # one slab load, then static slices
    b1 = vec[0:1, :]
    g2 = vec[1:2, :]
    be2 = vec[2:3, :]
    bf = vec[3:4, :]

    x = x_ref[...]

    # ---- bn1 (per-feature batch stats, biased variance, training mode).
    #      gamma/beta already folded into w1'/b1' in the wrapper.
    mu1 = jnp.mean(x, axis=0, keepdims=True)
    xc = x - mu1                                        # hoisted centered tensor
    var1 = jnp.mean(xc * xc, axis=0, keepdims=True)
    xn = xc * lax.rsqrt(var1 + EPS)

    # ---- linear1 (bn1 affine folded in) + relu  (full 128-wide MXU pass)
    h = jnp.dot(xn, w_ref[0], preferred_element_type=jnp.float32) + b1
    h = jnp.maximum(h, 0.0)

    # ---- linear2 (b2 dropped: exactly cancelled by bn2's mean subtraction)
    h = jnp.dot(h, w_ref[1], preferred_element_type=jnp.float32)

    # ---- bn2 + relu
    mu2 = jnp.mean(h, axis=0, keepdims=True)
    hc = h - mu2
    var2 = jnp.mean(hc * hc, axis=0, keepdims=True)
    h = hc * lax.rsqrt(var2 + EPS) * g2 + be2
    h = jnp.maximum(h, 0.0)

    # ---- linear_final: lane-dense (batch, LANE) store; real cols sliced in wrapper
    o_ref[...] = jnp.dot(h, w_ref[2], preferred_element_type=jnp.float32) + bf


def _pad2(a, rows, cols):
    return jnp.pad(a, ((0, rows - a.shape[0]), (0, cols - a.shape[1])))


def pack_params(params, lane=None):
    """One-time parameter packing (hoisted out of the per-call path).

    Folds bn1's affine into linear1:  w1' = g1.T * w1,  b1' = be1 @ w1 + b1,
    and drops b2 (a per-feature constant added before bn2 is exactly cancelled
    by bn2's batch-mean subtraction).

    Returns:
      vec: (8, lane)        rows [b1', g2, be2, bf, 0, 0, 0, 0]
      w:   (3, lane, lane)  [w1', w2, wf], zero-padded
    """
    (g1, be1, w1, b1, w2, b2, g2, be2, wf, bf) = params
    del b2  # exact no-op before bn2
    in_features, hidden = w1.shape
    out_features = wf.shape[1]
    if lane is None:
        lane = LANE * (-(-max(in_features, hidden, out_features) // LANE))

    w1p = w1 * g1.reshape(-1, 1)
    b1p = be1 @ w1 + b1

    rows = [b1p, g2, be2, bf]
    vec = jnp.stack(
        [jnp.pad(r.reshape(-1), (0, lane - r.size)) for r in rows]
        + [jnp.zeros((lane,), jnp.float32)] * (8 - len(rows)),
        axis=0,
    )
    w = jnp.stack(
        [_pad2(w1p, lane, lane), _pad2(w2, lane, lane), _pad2(wf, lane, lane)],
        axis=0,
    )
    return vec, w


@functools.partial(jax.jit, static_argnames=("out_features",))
def dqn_forward_packed(x, vec, w, out_features=1):
    """x: (n_batches, batch, in_features) f32.  Each leading slice is one
    independent BatchNorm batch (batch should be a multiple of 8 for
    lane/sublane-dense access).  Returns (n_batches, batch, out_features)."""
    n_batches, batch, in_features = x.shape
    lane = vec.shape[-1]
    x_pad = jnp.pad(x, ((0, 0), (0, 0), (0, lane - in_features)))

    flops = 2 * n_batches * batch * lane * lane * 3
    bytes_accessed = (x_pad.size + n_batches * batch * lane + vec.size + w.size) * 4

    out = pl.pallas_call(
        dqn_kernel,
        out_shape=jax.ShapeDtypeStruct((n_batches, batch, lane), jnp.float32),
        grid=(n_batches,),
        in_specs=[
            pl.BlockSpec((None, batch, lane), lambda i: (i, 0, 0)),
            pl.BlockSpec((8, lane), lambda i: (0, 0)),           # VMEM-resident
            pl.BlockSpec((3, lane, lane), lambda i: (0, 0, 0)),  # VMEM-resident
        ],
        out_specs=pl.BlockSpec((None, batch, lane), lambda i: (i, 0, 0)),
        compiler_params=pltpu.CompilerParams(
            dimension_semantics=("parallel",),
        ),
        cost_estimate=pl.CostEstimate(
            flops=flops,
            transcendentals=2 * n_batches * lane,  # rsqrt per feature per BN
            bytes_accessed=bytes_accessed,
        ),
    )(x_pad, vec, w)
    return out[:, :, :out_features]


def init_params(key, in_features, hidden, out_features=1):
    """Deterministic PyTorch-style init (uniform(-1/sqrt(fan_in), +1/sqrt(fan_in)))."""
    ks = jax.random.split(key, 6)

    def linear_init(kw, kb, fan_in, fan_out):
        bound = 1.0 / jnp.sqrt(float(fan_in))
        # PyTorch stores weight as (out, in); we pre-transpose to (in, out).
        w = jax.random.uniform(kw, (fan_in, fan_out), jnp.float32, -bound, bound)
        b = jax.random.uniform(kb, (1, fan_out), jnp.float32, -bound, bound)
        return w, b

    w1, b1 = linear_init(ks[0], ks[1], in_features, hidden)
    w2, b2 = linear_init(ks[2], ks[3], hidden, hidden)
    wf, bf = linear_init(ks[4], ks[5], hidden, out_features)

    g1 = jnp.ones((1, in_features), jnp.float32)     # bn1 weight
    be1 = jnp.zeros((1, in_features), jnp.float32)   # bn1 bias
    g2 = jnp.ones((1, hidden), jnp.float32)          # bn2 weight
    be2 = jnp.zeros((1, hidden), jnp.float32)        # bn2 bias

    return (g1, be1, w1, b1, w2, b2, g2, be2, wf, bf)


def dqn_reference(x, params):
    """Pure-JAX reference (un-padded, un-folded) for one BN batch."""
    (g1, be1, w1, b1, w2, b2, g2, be2, wf, bf) = params
    mu1 = jnp.mean(x, axis=0, keepdims=True)
    var1 = jnp.mean((x - mu1) ** 2, axis=0, keepdims=True)
    h = (x - mu1) / jnp.sqrt(var1 + EPS) * g1 + be1
    h = jnp.maximum(h @ w1 + b1, 0.0)
    h = h @ w2 + b2
    mu2 = jnp.mean(h, axis=0, keepdims=True)
    var2 = jnp.mean((h - mu2) ** 2, axis=0, keepdims=True)
    h = (h - mu2) / jnp.sqrt(var2 + EPS) * g2 + be2
    h = jnp.maximum(h, 0.0)
    return h @ wf + bf


if __name__ == "__main__":
    key = jax.random.PRNGKey(0)
    kx, kp = jax.random.split(key)

    n_batches, batch, in_features, hidden, out_features = 4, 8, 16, 32, 1
    x = jax.random.normal(kx, (n_batches, batch, in_features), jnp.float32)
    params = init_params(kp, in_features, hidden, out_features)

    # One-time packing (hoisted out of the hot path).
    vec, w = pack_params(params)

    out = dqn_forward_packed(x, vec, w, out_features=out_features)
    out = jax.block_until_ready(out)

    ref = jax.vmap(lambda xb: dqn_reference(xb, params))(x)
    assert out.shape == (n_batches, batch, out_features)
    assert jnp.allclose(out, ref, atol=1e-4, rtol=1e-4)

    print("KERNEL_OK")
</pallas_src>

<mosaic_0001>
module attributes {stable_mosaic.version = 11 : i64} {
  func.func @dqn_kernel(%arg0: i32, %arg1: memref<1x8x128xf32, #tpu.memory_space<vmem>>, %arg2: memref<8x128xf32, #tpu.memory_space<vmem>>, %arg3: memref<3x128x128xf32, #tpu.memory_space<vmem>>, %arg4: memref<1x8x128xf32, #tpu.memory_space<vmem>>) attributes {dimension_semantics = [#tpu.dimension_semantics<parallel>], iteration_bounds = array<i64: 4>, scalar_prefetch = 0 : i64, scratch_operands = 0 : i64, tpu.core_type = #tpu.core_type<tc>, window_params = [{transform_indices = @transform_0, window_bounds = array<i64: 1, 8, 128>}, {pipeline_mode = #tpu.pipeline_mode<synchronous>, transform_indices = @transform_1, window_bounds = array<i64: 8, 128>}, {pipeline_mode = #tpu.pipeline_mode<synchronous>, transform_indices = @transform_2, window_bounds = array<i64: 3, 128, 128>}, {transform_indices = @transform_3, window_bounds = array<i64: 1, 8, 128>}]} {
    %c0 = arith.constant 0 : index
    %c0_0 = arith.constant 0 : index
    %0 = vector.load %arg2[%c0, %c0_0] : memref<8x128xf32, #tpu.memory_space<vmem>>, vector<8x128xf32>
    %1 = vector.extract_strided_slice %0 {offsets = [0, 0], sizes = [1, 128], strides = [1, 1]} : vector<8x128xf32> to vector<1x128xf32>
    %2 = vector.extract_strided_slice %0 {offsets = [1, 0], sizes = [1, 128], strides = [1, 1]} : vector<8x128xf32> to vector<1x128xf32>
    %3 = vector.extract_strided_slice %0 {offsets = [2, 0], sizes = [1, 128], strides = [1, 1]} : vector<8x128xf32> to vector<1x128xf32>
    %4 = vector.extract_strided_slice %0 {offsets = [3, 0], sizes = [1, 128], strides = [1, 1]} : vector<8x128xf32> to vector<1x128xf32>
    %c0_1 = arith.constant 0 : index
    %c0_2 = arith.constant 0 : index
    %c0_3 = arith.constant 0 : index
    %5 = vector.load %arg1[%c0_1, %c0_2, %c0_3] : memref<1x8x128xf32, #tpu.memory_space<vmem>>, vector<1x8x128xf32>
    %6 = vector.shape_cast %5 : vector<1x8x128xf32> to vector<8x128xf32>
    %cst = arith.constant dense<0.000000e+00> : vector<128xf32>
    %7 = vector.multi_reduction <add>, %6, %cst [0] : vector<8x128xf32> to vector<128xf32>
    %8 = vector.shape_cast %7 : vector<128xf32> to vector<1x128xf32>
    %cst_4 = arith.constant 8.000000e+00 : f32
    %9 = vector.broadcast %cst_4 : f32 to vector<1x128xf32>
    %10 = arith.divf %8, %9 : vector<1x128xf32>
    %11 = vector.broadcast %10 : vector<1x128xf32> to vector<8x128xf32>
    %12 = arith.subf %6, %11 : vector<8x128xf32>
    %13 = arith.mulf %12, %12 : vector<8x128xf32>
    %cst_5 = arith.constant dense<0.000000e+00> : vector<128xf32>
    %14 = vector.multi_reduction <add>, %13, %cst_5 [0] : vector<8x128xf32> to vector<128xf32>
    %15 = vector.shape_cast %14 : vector<128xf32> to vector<1x128xf32>
    %cst_6 = arith.constant 8.000000e+00 : f32
    %16 = vector.broadcast %cst_6 : f32 to vector<1x128xf32>
    %17 = arith.divf %15, %16 : vector<1x128xf32>
    %cst_7 = arith.constant 9.99999974E-6 : f32
    %18 = vector.broadcast %cst_7 : f32 to vector<1x128xf32>
    %19 = arith.addf %17, %18 : vector<1x128xf32>
    %20 = math.rsqrt %19 : vector<1x128xf32>
    %21 = vector.broadcast %20 : vector<1x128xf32> to vector<8x128xf32>
    %22 = arith.mulf %12, %21 : vector<8x128xf32>
    %c0_8 = arith.constant 0 : index
    %c0_9 = arith.constant 0 : index
    %c0_10 = arith.constant 0 : index
    %23 = vector.load %arg3[%c0_8, %c0_9, %c0_10] : memref<3x128x128xf32, #tpu.memory_space<vmem>>, vector<1x128x128xf32>
    %24 = vector.shape_cast %23 : vector<1x128x128xf32> to vector<128x128xf32>
    %cst_11 = arith.constant dense<0.000000e+00> : vector<8x128xf32>
    %25 = tpu.matmul %22, %24, %cst_11 {dimension_numbers = #tpu.dot_dimension_numbers<[1], [0], [0], [1], [0, 0, 1, 1], [], []>} : vector<8x128xf32>, vector<128x128xf32>, vector<8x128xf32> -> vector<8x128xf32>
    %26 = vector.broadcast %1 : vector<1x128xf32> to vector<8x128xf32>
    %27 = arith.addf %25, %26 : vector<8x128xf32>
    %cst_12 = arith.constant 0.000000e+00 : f32
    %28 = vector.broadcast %cst_12 : f32 to vector<8x128xf32>
    %29 = arith.maximumf %27, %28 : vector<8x128xf32>
    %c1 = arith.constant 1 : index
    %c0_13 = arith.constant 0 : index
    %c0_14 = arith.constant 0 : index
    %30 = vector.load %arg3[%c1, %c0_13, %c0_14] : memref<3x128x128xf32, #tpu.memory_space<vmem>>, vector<1x128x128xf32>
    %31 = vector.shape_cast %30 : vector<1x128x128xf32> to vector<128x128xf32>
    %cst_15 = arith.constant dense<0.000000e+00> : vector<8x128xf32>
    %32 = tpu.matmul %29, %31, %cst_15 {dimension_numbers = #tpu.dot_dimension_numbers<[1], [0], [0], [1], [0, 0, 1, 1], [], []>} : vector<8x128xf32>, vector<128x128xf32>, vector<8x128xf32> -> vector<8x128xf32>
    %cst_16 = arith.constant dense<0.000000e+00> : vector<128xf32>
    %33 = vector.multi_reduction <add>, %32, %cst_16 [0] : vector<8x128xf32> to vector<128xf32>
    %34 = vector.shape_cast %33 : vector<128xf32> to vector<1x128xf32>
    %cst_17 = arith.constant 8.000000e+00 : f32
    %35 = vector.broadcast %cst_17 : f32 to vector<1x128xf32>
    %36 = arith.divf %34, %35 : vector<1x128xf32>
    %37 = vector.broadcast %36 : vector<1x128xf32> to vector<8x128xf32>
    %38 = arith.subf %32, %37 : vector<8x128xf32>
    %39 = arith.mulf %38, %38 : vector<8x128xf32>
    %cst_18 = arith.constant dense<0.000000e+00> : vector<128xf32>
    %40 = vector.multi_reduction <add>, %39, %cst_18 [0] : vector<8x128xf32> to vector<128xf32>
    %41 = vector.shape_cast %40 : vector<128xf32> to vector<1x128xf32>
    %cst_19 = arith.constant 8.000000e+00 : f32
    %42 = vector.broadcast %cst_19 : f32 to vector<1x128xf32>
    %43 = arith.divf %41, %42 : vector<1x128xf32>
    %cst_20 = arith.constant 9.99999974E-6 : f32
    %44 = vector.broadcast %cst_20 : f32 to vector<1x128xf32>
    %45 = arith.addf %43, %44 : vector<1x128xf32>
    %46 = math.rsqrt %45 : vector<1x128xf32>
    %47 = vector.broadcast %46 : vector<1x128xf32> to vector<8x128xf32>
    %48 = arith.mulf %38, %47 : vector<8x128xf32>
    %49 = vector.broadcast %2 : vector<1x128xf32> to vector<8x128xf32>
    %50 = arith.mulf %48, %49 : vector<8x128xf32>
    %51 = vector.broadcast %3 : vector<1x128xf32> to vector<8x128xf32>
    %52 = arith.addf %50, %51 : vector<8x128xf32>
    %cst_21 = arith.constant 0.000000e+00 : f32
    %53 = vector.broadcast %cst_21 : f32 to vector<8x128xf32>
    %54 = arith.maximumf %52, %53 : vector<8x128xf32>
    %c2 = arith.constant 2 : index
    %c0_22 = arith.constant 0 : index
    %c0_23 = arith.constant 0 : index
    %55 = vector.load %arg3[%c2, %c0_22, %c0_23] : memref<3x128x128xf32, #tpu.memory_space<vmem>>, vector<1x128x128xf32>
    %56 = vector.shape_cast %55 : vector<1x128x128xf32> to vector<128x128xf32>
    %cst_24 = arith.constant dense<0.000000e+00> : vector<8x128xf32>
    %57 = tpu.matmul %54, %56, %cst_24 {dimension_numbers = #tpu.dot_dimension_numbers<[1], [0], [0], [1], [0, 0, 1, 1], [], []>} : vector<8x128xf32>, vector<128x128xf32>, vector<8x128xf32> -> vector<8x128xf32>
    %58 = vector.broadcast %4 : vector<1x128xf32> to vector<8x128xf32>
    %59 = arith.addf %57, %58 : vector<8x128xf32>
    %c0_25 = arith.constant 0 : index
    %c0_26 = arith.constant 0 : index
    %c0_27 = arith.constant 0 : index
    %60 = vector.load %arg4[%c0_25, %c0_26, %c0_27] : memref<1x8x128xf32, #tpu.memory_space<vmem>>, vector<1x8x128xf32>
    %61 = vector.shape_cast %60 : vector<1x8x128xf32> to vector<8x128xf32>
    %62 = vector.shape_cast %59 : vector<8x128xf32> to vector<1x8x128xf32>
    tpu.vector_store %arg4[%c0_25, %c0_26, %c0_27], %62 {strides = array<i32>} : memref<1x8x128xf32, #tpu.memory_space<vmem>>, vector<1x8x128xf32>,
    return
  }
  func.func @transform_0(%arg0: i32) -> (i32, i32, i32) {
    %c0_i32 = arith.constant 0 : i32
    %c0_i32_0 = arith.constant 0 : i32
    %c0_i32_1 = arith.constant 0 : i32
    return %arg0, %c0_i32, %c0_i32_0 : i32, i32, i32
  }
  func.func @transform_1(%arg0: i32) -> (i32, i32) {
    %c0_i32 = arith.constant 0 : i32
    %c0_i32_0 = arith.constant 0 : i32
    %c0_i32_1 = arith.constant 0 : i32
    return %c0_i32, %c0_i32_0 : i32, i32
  }
  func.func @transform_2(%arg0: i32) -> (i32, i32, i32) {
    %c0_i32 = arith.constant 0 : i32
    %c0_i32_0 = arith.constant 0 : i32
    %c0_i32_1 = arith.constant 0 : i32
    %c0_i32_2 = arith.constant 0 : i32
    return %c0_i32, %c0_i32_0, %c0_i32_1 : i32, i32, i32
  }
  func.func @transform_3(%arg0: i32) -> (i32, i32, i32) {
    %c0_i32 = arith.constant 0 : i32
    %c0_i32_0 = arith.constant 0 : i32
    %c0_i32_1 = arith.constant 0 : i32
    return %arg0, %c0_i32, %c0_i32_0 : i32, i32, i32
  }
}

</mosaic_0001>

<llo_original>
// kernel: dqn_forward_packed.1
$region0: #{dqn_forward_packed.1}
  #allocation0 [shape = 'u32[]', space=smem, size = 0x4, offset = 0x4, fixed_abs, tag = 'smem constant byte address 0x4 - core index']
  #allocation1 [shape = 'u32[144,128]{1,0:T(1,128)}', space=vmem, size = 0x12000, scoped, tag = 'internal scratch']
  %s0 = inlined_call_operand.vmem [shape: f32[4,8,128], index: 0, kind: input, shape index: {}]
  %s1 = inlined_call_operand.vmem [shape: f32[8,128], index: 1, kind: input, shape index: {}]
  %s2 = inlined_call_operand.hbm [shape: f32[3,128,128], index: 2, kind: input, shape index: {}]
  %s3 = inlined_call_operand.vmem [shape: f32[4,8,128], index: 3, kind: output, shape index: {}]
  %s4 = sld [smem:[#allocation0]]
  $region49: #{dqn_forward_packed.1} parent=0
    _
  %s6 = ssub.s32 1, %s4
  %s7 = scalar_select 0, %s6, %s4
  $region1: #{dqn_forward_packed.1} parent=0
    #allocation2 [shape = 'u8[196608]{0}', space=vmem, size = 0x30000, scoped, tag = 'input window, operand 2, single buffered']
    #allocation3 [shape = 's32[2]{0}', space=sflag, size = 0x8, scoped, tag = 'scoped memory for dqn_forward_packed.1']
    %8 = vsyncpa [#allocation3], 0
    loop: start=0, step=1, limit=6
    $region2: #{dqn_forward_packed.1} parent=1 // loop_pre_header
      _
    $region3: #{dqn_forward_packed.1} parent=1 // loop_header
      %s10 = sphi 0, %s14
      %p11 = scmp.ge.s32.totalorder %s10, 6
      %s20 = sphi 0, %s22
      %s23 = sphi 0, %s20
      %s24 = sphi 0, %s23
      %s40 = sphi 0, %s24
      %s44 = sphi 0, %s44
      %s46 = sphi 0, %s44
      %s47 = sphi 0, %s46
      %s61 = sphi 0, %s47
      %s65 = sphi 0, %s65
      %s67 = sphi 0, %s65
      %s68 = sphi 0, %s67
      %s82 = sphi 0, %s68
      %s88 = sphi 0, %s90
      %s91 = sphi 0, %s88
      %s92 = sphi 0, %s91
      %s108 = sphi 0, %s92
    $region4: #{dqn_forward_packed.1} parent=1 // loop_header_branch
      %13 = sbr.rel (%p11) target = $region8
    $region5: #{dqn_forward_packed.1} parent=1 // loop_body
      %s15 = ssub.s32 %s10, 1
      %s16 = ssub.s32 %s10, 2
      %s17 = sadd.s32 %s10, 1
      %s18 = ssub.s32 %s10, %s17
      %p19 = scmp.eq.s32.totalorder %s18, 0
      %s21 = sadd.s32 %s20, 1
      %s22 = scalar_select %p19, %s20, %s21
      %p25 = pneg %p19
      %p26 = scmp.eq.s32.totalorder %s10, 3
      %p27 = por %p25, %p26
      %p28 = scmp.ne.s32.totalorder %s20, %s23
      %p29 = scmp.eq.s32.totalorder %s10, 0
      %p30 = por %p28, %p29
      %p31 = scmp.ne.s32.totalorder %s20, %s23
      %p32 = scmp.eq.s32.totalorder %s15, 3
      %p33 = por %p31, %p32
      %p34 = scmp.ne.s32.totalorder %s23, %s24
      %p35 = scmp.eq.s32.totalorder %s15, 0
      %p36 = por %p34, %p35
      %p37 = scmp.ne.s32.totalorder %s23, %s24
      %p38 = scmp.eq.s32.totalorder %s16, 3
      %p39 = por %p37, %p38
      %p41 = scmp.ne.s32.totalorder %s24, %s40
      %p42 = scmp.eq.s32.totalorder %s16, 0
      %p43 = por %p41, %p42
      %s45 = sadd.s32 %s44, 1
      %p48 = scmp.eq.s32.totalorder %s10, 3
      %p49 = scmp.ne.s32.totalorder %s44, %s46
      %p50 = scmp.eq.s32.totalorder %s10, 0
      %p51 = por %p49, %p50
      %p52 = scmp.ne.s32.totalorder %s44, %s46
      %p53 = scmp.eq.s32.totalorder %s15, 3
      %p54 = por %p52, %p53
      %p55 = scmp.ne.s32.totalorder %s46, %s47
      %p56 = scmp.eq.s32.totalorder %s15, 0
      %p57 = por %p55, %p56
      %p58 = scmp.ne.s32.totalorder %s46, %s47
      %p59 = scmp.eq.s32.totalorder %s16, 3
      %p60 = por %p58, %p59
      %p62 = scmp.ne.s32.totalorder %s47, %s61
      %p63 = scmp.eq.s32.totalorder %s16, 0
      %p64 = por %p62, %p63
      %s66 = sadd.s32 %s65, 1
      %p69 = scmp.eq.s32.totalorder %s10, 3
      %p70 = scmp.ne.s32.totalorder %s65, %s67
      %p71 = scmp.eq.s32.totalorder %s10, 0
      %p72 = por %p70, %p71
      %p73 = scmp.ne.s32.totalorder %s65, %s67
      %p74 = scmp.eq.s32.totalorder %s15, 3
      %p75 = por %p73, %p74
      %p76 = scmp.ne.s32.totalorder %s67, %s68
      %p77 = scmp.eq.s32.totalorder %s15, 0
      %p78 = por %p76, %p77
      %p79 = scmp.ne.s32.totalorder %s67, %s68
      %p80 = scmp.eq.s32.totalorder %s16, 3
      %p81 = por %p79, %p80
      %p83 = scmp.ne.s32.totalorder %s68, %s82
      %p84 = scmp.eq.s32.totalorder %s16, 0
      %p85 = por %p83, %p84
      %s86 = ssub.s32 %s10, %s17
      %p87 = scmp.eq.s32.totalorder %s86, 0
      %s89 = sadd.s32 %s88, 1
      %s90 = scalar_select %p87, %s88, %s89
      %p93 = pneg %p87
      %p94 = scmp.eq.s32.totalorder %s10, 3
      %p95 = por %p93, %p94
      %p96 = scmp.ne.s32.totalorder %s88, %s91
      %p97 = scmp.eq.s32.totalorder %s10, 0
      %p98 = por %p96, %p97
      %p99 = scmp.ne.s32.totalorder %s88, %s91
      %p100 = scmp.eq.s32.totalorder %s15, 3
      %p101 = por %p99, %p100
      %p102 = scmp.ne.s32.totalorder %s91, %s92
      %p103 = scmp.eq.s32.totalorder %s15, 0
      %p104 = por %p102, %p103
      %p105 = scmp.ne.s32.totalorder %s91, %s92
      %p106 = scmp.eq.s32.totalorder %s16, 3
      %p107 = por %p105, %p106
      %p109 = scmp.ne.s32.totalorder %s92, %s108
      %p110 = scmp.eq.s32.totalorder %s16, 0
      %p111 = por %p109, %p110
      %p112 = scmp.le.s32.totalorder 1, %s10
      %p113 = scmp.lt.s32.totalorder %s10, 5
      %p114 = pnand %p112, %p113
      %p115 = pneg %p114
      // Predicated region
      $region9: #{dqn_forward_packed.1} parent=5 // pred_check
        _
      $region10: #{dqn_forward_packed.1} parent=5 // pred_check_branch
        %117 = sbr.rel (%p114) target = $region12
      $region11: #{dqn_forward_packed.1} parent=5 // pred_region
        %s118 = ssub.s32 %s10, 1
        // Predicated region
        $region13: #{dqn_forward_packed.1} parent=11 // pred_check
          %p119 = pneg %p57
        $region14: #{dqn_forward_packed.1} parent=11 // pred_check_branch
          %121 = sbr.rel (%p119) target = $region16
        $region15: #{dqn_forward_packed.1} parent=11 // pred_region
          _
        $region16: #{dqn_forward_packed.1} parent=11 // pred_fallthru
          _
        // Predicated region
        $region17: #{dqn_forward_packed.1} parent=11 // pred_check
          %p122 = pneg %p78
        $region18: #{dqn_forward_packed.1} parent=11 // pred_check_branch
          %124 = sbr.rel (%p122) target = $region20
        $region19: #{dqn_forward_packed.1} parent=11 // pred_region
          %s126 = ssub.s32 6144, 6144
          %127 = vsyncadd [#allocation3], %s126
          %s128 = sshll.u32 [#allocation2], 4
          %s129 = int_to_ptr.vmem [resolvable:$true] %s128
          %134 = dma.hbm_to_vmem [thread:$0]  %s2, 6144, %s129, [#allocation3], 128, 128, 8
        $region20: #{dqn_forward_packed.1} parent=11 // pred_fallthru
          _
      $region12: #{dqn_forward_packed.1} parent=5 // pred_fallthru
        _
      %p135 = scmp.lt.s32.totalorder %s10, 4
      // Predicated region
      $region21: #{dqn_forward_packed.1} parent=5 // pred_check
        %p136 = pneg %p135
      $region22: #{dqn_forward_packed.1} parent=5 // pred_check_branch
        %138 = sbr.rel (%p136) target = $region24
      $region23: #{dqn_forward_packed.1} parent=5 // pred_region
        // Predicated region
        $region25: #{dqn_forward_packed.1} parent=23 // pred_check
          %p139 = pneg %p30
        $region26: #{dqn_forward_packed.1} parent=23 // pred_check_branch
          %141 = sbr.rel (%p139) target = $region28
        $region27: #{dqn_forward_packed.1} parent=23 // pred_region
          %p142 = scmp.lt.s32.totalorder %s10, 3
          %s143 = scalar_select %p142, %s10, 3
          %s144 = smul.addr %s143, 8
          %s145 = scalar_lea.vmem %s0, %s144
        $region28: #{dqn_forward_packed.1} parent=23 // pred_fallthru
          _
      $region24: #{dqn_forward_packed.1} parent=5 // pred_fallthru
        _
      %p146 = scmp.le.s32.totalorder 1, %s10
      %p147 = scmp.lt.s32.totalorder %s10, 5
      %p148 = pnand %p146, %p147
      %p149 = pneg %p148
      // Predicated region
      $region29: #{dqn_forward_packed.1} parent=5 // pred_check
        _
      $region30: #{dqn_forward_packed.1} parent=5 // pred_check_branch
        %151 = sbr.rel (%p148) target = $region32
      $region31: #{dqn_forward_packed.1} parent=5 // pred_region
        %s152 = ssub.s32 %s10, 1
        // Predicated region
        $region33: #{dqn_forward_packed.1} parent=31 // pred_check
          %p153 = pneg %p78
        $region34: #{dqn_forward_packed.1} parent=31 // pred_check_branch
          %155 = sbr.rel (%p153) target = $region36
        $region35: #{dqn_forward_packed.1} parent=31 // pred_region
          %156 = dma.done [#allocation3], 6144
        $region36: #{dqn_forward_packed.1} parent=31 // pred_fallthru
          _
        %p157 = scmp.lt.s32.totalorder %s15, 3
        %s158 = scalar_select %p157, %s15, 3
        %s159 = smul.addr %s158, 8
        %s160 = scalar_lea.vmem %s0, %s159
        %p161 = pneg %p36
        %p162 = pneg %p33
        %p163 = pneg %p57
        %p164 = pneg %p54
        %p165 = pneg %p78
        %p166 = pneg %p75
        %p167 = pneg %p104
        %p168 = pneg %p101
        %p169 = scmp.lt.s32.totalorder %s15, 3
        %s170 = scalar_select %p169, %s15, 3
        %s171 = smul.addr %s170, 8
        %s172 = scalar_lea.vmem %s3, %s171
        %p173 = scmp.lt.s32.totalorder %s15, 3
        %s174 = scalar_select %p173, %s15, 3
        %s175 = smul.addr %s174, 8
        %s176 = scalar_lea.vmem %s0, %s175
        %p177 = scmp.lt.s32.totalorder %s15, 3
        %s178 = scalar_select %p177, %s15, 3
        %s179 = smul.addr %s178, 8
        %s180 = scalar_lea.vmem %s3, %s179
        %v181 = vld [vmem:[%s1] sm:$0xff]
        %v182 = vld [vmem:[%s176] sm:$0xff]
        %v183 = vrot.slane %v182, 4
        %v184 = vadd.f32 %v182, %v183
        %v185 = vrot.slane %v184, 2
        %v186 = vadd.f32 %v184, %v185
        %v187 = vrot.slane %v186, 1
        %v188 = vadd.f32 %v186, %v187
        %v189 = vrcp.pop 8.0
        %v190 = vmul.f32 %v188, %v189
        %v191 = vsub.f32 %v182, %v190
        %v192 = vmul.f32 %v191, %v191
        %v193 = vrot.slane %v192, 4
        %v194 = vadd.f32 %v192, %v193
        %v195 = vrot.slane %v194, 2
        %v196 = vadd.f32 %v194, %v195
        %v197 = vrot.slane %v196, 1
        %v198 = vadd.f32 %v196, %v197
        %v199 = vmul.f32 %v198, %v189
        %v200 = vadd.f32 %v199, 1e-05
        %v201 = vrsqrt.pop %v200
        %v202 = vmul.f32 %v191, %v201
        %v203 = vld [vmem:[#allocation2] sm:$0xff]
        %v204 = vld [vmem:[#allocation2 + $0x8] sm:$0xff]
        %v205 = vld [vmem:[#allocation2 + $0x10] sm:$0xff]
        %v206 = vld [vmem:[#allocation2 + $0x18] sm:$0xff]
        %v207 = vld [vmem:[#allocation2 + $0x20] sm:$0xff]
        %v208 = vld [vmem:[#allocation2 + $0x28] sm:$0xff]
        %v209 = vld [vmem:[#allocation2 + $0x30] sm:$0xff]
        %v210 = vld [vmem:[#allocation2 + $0x38] sm:$0xff]
        %v211 = vld [vmem:[#allocation2 + $0x40] sm:$0xff]
        %v212 = vld [vmem:[#allocation2 + $0x48] sm:$0xff]
        %v213 = vld [vmem:[#allocation2 + $0x50] sm:$0xff]
        %v214 = vld [vmem:[#allocation2 + $0x58] sm:$0xff]
        %v215 = vld [vmem:[#allocation2 + $0x60] sm:$0xff]
        %v216 = vld [vmem:[#allocation2 + $0x68] sm:$0xff]
        %v217 = vld [vmem:[#allocation2 + $0x70] sm:$0xff]
        %v218 = vld [vmem:[#allocation2 + $0x78] sm:$0xff]
        %v219 = vlaneseq
        %v220 = vshrl.u32 %v219, 7
        %v221 = vsub.s32 0, %v220
        %v222 = vrot.slane %v181, %v221
        %223 = vmatprep.subr.mxu0 0.0
        %224 = vmatpush1.msra.mxu0 %v203
        %225 = vmatprep.subr.mxu0 0.0
        %226 = vmatpush1.msra.mxu0 %v204
        %227 = vmatprep.subr.mxu0 0.0
        %228 = vmatpush1.msra.mxu0 %v205
        %229 = vmatprep.subr.mxu0 0.0
        %230 = vmatpush1.msra.mxu0 %v206
        %231 = vmatprep.subr.mxu0 0.0
        %232 = vmatpush1.msra.mxu0 %v207
        %233 = vmatprep.subr.mxu0 0.0
        %234 = vmatpush1.msra.mxu0 %v208
        %235 = vmatprep.subr.mxu0 0.0
        %236 = vmatpush1.msra.mxu0 %v209
        %237 = vmatprep.subr.mxu0 0.0
        %238 = vmatpush1.msra.mxu0 %v210
        %239 = vmatprep.subr.mxu0 0.0
        %240 = vmatpush1.msra.mxu0 %v211
        %241 = vmatprep.subr.mxu0 0.0
        %242 = vmatpush1.msra.mxu0 %v212
        %243 = vmatprep.subr.mxu0 0.0
        %244 = vmatpush1.msra.mxu0 %v213
        %245 = vmatprep.subr.mxu0 0.0
        %246 = vmatpush1.msra.mxu0 %v214
        %247 = vmatprep.subr.mxu0 0.0
        %248 = vmatpush1.msra.mxu0 %v215
        %249 = vmatprep.subr.mxu0 0.0
        %250 = vmatpush1.msra.mxu0 %v216
        %251 = vmatprep.subr.mxu0 0.0
        %252 = vmatpush1.msra.mxu0 %v217
        %253 = vmatprep.subr.mxu0 0.0
        %254 = vmatpush1.msra.mxu0 %v218
        %255 = vmatprep.subr.mxu0 0.0
        %256 = vmatpush1.msra.mxu0 0.0
        %257 = vmatprep.subr.mxu0 0.0
        %258 = vmatpush1.msra.mxu0 0.0
        %259 = vmatprep.subr.mxu0 0.0
        %260 = vmatpush1.msra.mxu0 0.0
        %261 = vmatprep.subr.mxu0 0.0
        %262 = vmatpush1.msra.mxu0 0.0
        %263 = vmatprep.subr.mxu0 0.0
        %264 = vmatpush1.msra.mxu0 0.0
        %265 = vmatprep.subr.mxu0 0.0
        %266 = vmatpush1.msra.mxu0 0.0
        %267 = vmatprep.subr.mxu0 0.0
        %268 = vmatpush1.msra.mxu0 0.0
        %269 = vmatprep.subr.mxu0 0.0
        %270 = vmatpush1.msra.mxu0 0.0
        %271 = vmatprep.subr.mxu0 0.0
        %272 = vmatpush1.msra.mxu0 0.0
        %273 = vmatprep.subr.mxu0 0.0
        %274 = vmatpush1.msra.mxu0 0.0
        %275 = vmatprep.subr.mxu0 0.0
        %276 = vmatpush1.msra.mxu0 0.0
        %277 = vmatprep.subr.mxu0 0.0
        %278 = vmatpush1.msra.mxu0 0.0
        %279 = vmatprep.subr.mxu0 0.0
        %280 = vmatpush1.msra.mxu0 0.0
        %281 = vmatprep.subr.mxu0 0.0
        %282 = vmatpush1.msra.mxu0 0.0
        %283 = vmatprep.subr.mxu0 0.0
        %284 = vmatpush1.msra.mxu0 0.0
        %285 = vmatprep.subr.mxu0 0.0
        %286 = vmatpush1.msra.mxu0 0.0
        %287 = vmatprep.mubr.f32.mxu0 0.0
        %288 = vmatmul.mubr.f32.gmra.mrb[0].mxu0 %v202
        %v289 = vpop.f32.mrb[0].mxu0
        %v290 = vadd.f32 %v222, %v289
        %v291 = vpop.f32.mrb[0].mxu0
        %292 = vdwg.mxu0
        %v293 = vmax.f32 %v290, 0.0
        %s294 = scalar_lea.vmem [#allocation2], 128
        %v295 = vld [vmem:[%s294] sm:$0xff]
        %v296 = vld [vmem:[%s294 + $0x8] sm:$0xff]
        %v297 = vld [vmem:[%s294 + $0x10] sm:$0xff]
        %v298 = vld [vmem:[%s294 + $0x18] sm:$0xff]
        %v299 = vld [vmem:[%s294 + $0x20] sm:$0xff]
        %v300 = vld [vmem:[%s294 + $0x28] sm:$0xff]
        %v301 = vld [vmem:[%s294 + $0x30] sm:$0xff]
        %v302 = vld [vmem:[%s294 + $0x38] sm:$0xff]
        %v303 = vld [vmem:[%s294 + $0x40] sm:$0xff]
        %v304 = vld [vmem:[%s294 + $0x48] sm:$0xff]
        %v305 = vld [vmem:[%s294 + $0x50] sm:$0xff]
        %v306 = vld [vmem:[%s294 + $0x58] sm:$0xff]
        %v307 = vld [vmem:[%s294 + $0x60] sm:$0xff]
        %v308 = vld [vmem:[%s294 + $0x68] sm:$0xff]
        %v309 = vld [vmem:[%s294 + $0x70] sm:$0xff]
        %v310 = vld [vmem:[%s294 + $0x78] sm:$0xff]
        %311 = vmatprep.subr.mxu0 0.0
        %312 = vmatpush1.msra.mxu0 %v295
        %313 = vmatprep.subr.mxu0 0.0
        %314 = vmatpush1.msra.mxu0 %v296
        %315 = vmatprep.subr.mxu0 0.0
        %316 = vmatpush1.msra.mxu0 %v297
        %317 = vmatprep.subr.mxu0 0.0
        %318 = vmatpush1.msra.mxu0 %v298
        %319 = vmatprep.subr.mxu0 0.0
        %320 = vmatpush1.msra.mxu0 %v299
        %321 = vmatprep.subr.mxu0 0.0
        %322 = vmatpush1.msra.mxu0 %v300
        %323 = vmatprep.subr.mxu0 0.0
        %324 = vmatpush1.msra.mxu0 %v301
        %325 = vmatprep.subr.mxu0 0.0
        %326 = vmatpush1.msra.mxu0 %v302
        %327 = vmatprep.subr.mxu0 0.0
        %328 = vmatpush1.msra.mxu0 %v303
        %329 = vmatprep.subr.mxu0 0.0
        %330 = vmatpush1.msra.mxu0 %v304
        %331 = vmatprep.subr.mxu0 0.0
        %332 = vmatpush1.msra.mxu0 %v305
        %333 = vmatprep.subr.mxu0 0.0
        %334 = vmatpush1.msra.mxu0 %v306
        %335 = vmatprep.subr.mxu0 0.0
        %336 = vmatpush1.msra.mxu0 %v307
        %337 = vmatprep.subr.mxu0 0.0
        %338 = vmatpush1.msra.mxu0 %v308
        %339 = vmatprep.subr.mxu0 0.0
        %340 = vmatpush1.msra.mxu0 %v309
        %341 = vmatprep.subr.mxu0 0.0
        %342 = vmatpush1.msra.mxu0 %v310
        %343 = vmatprep.subr.mxu0 0.0
        %344 = vmatpush1.msra.mxu0 0.0
        %345 = vmatprep.subr.mxu0 0.0
        %346 = vmatpush1.msra.mxu0 0.0
        %347 = vmatprep.subr.mxu0 0.0
        %348 = vmatpush1.msra.mxu0 0.0
        %349 = vmatprep.subr.mxu0 0.0
        %350 = vmatpush1.msra.mxu0 0.0
        %351 = vmatprep.subr.mxu0 0.0
        %352 = vmatpush1.msra.mxu0 0.0
        %353 = vmatprep.subr.mxu0 0.0
        %354 = vmatpush1.msra.mxu0 0.0
        %355 = vmatprep.subr.mxu0 0.0
        %356 = vmatpush1.msra.mxu0 0.0
        %357 = vmatprep.subr.mxu0 0.0
        %358 = vmatpush1.msra.mxu0 0.0
        %359 = vmatprep.subr.mxu0 0.0
        %360 = vmatpush1.msra.mxu0 0.0
        %361 = vmatprep.subr.mxu0 0.0
        %362 = vmatpush1.msra.mxu0 0.0
        %363 = vmatprep.subr.mxu0 0.0
        %364 = vmatpush1.msra.mxu0 0.0
        %365 = vmatprep.subr.mxu0 0.0
        %366 = vmatpush1.msra.mxu0 0.0
        %367 = vmatprep.subr.mxu0 0.0
        %368 = vmatpush1.msra.mxu0 0.0
        %369 = vmatprep.subr.mxu0 0.0
        %370 = vmatpush1.msra.mxu0 0.0
        %371 = vmatprep.subr.mxu0 0.0
        %372 = vmatpush1.msra.mxu0 0.0
        %373 = vmatprep.subr.mxu0 0.0
        %374 = vmatpush1.msra.mxu0 0.0
        %375 = vmatprep.mubr.f32.mxu0 0.0
        %376 = vmatmul.mubr.f32.gmra.mrb[0].mxu0 %v293
        %v377 = vpop.f32.mrb[0].mxu0
        %v378 = vadd.f32 0.0, %v377
        %v379 = vpop.f32.mrb[0].mxu0
        %380 = vdwg.mxu0
        %v381 = vrot.slane %v378, 4
        %v382 = vadd.f32 %v378, %v381
        %v383 = vrot.slane %v382, 2
        %v384 = vadd.f32 %v382, %v383
        %v385 = vrot.slane %v384, 1
        %v386 = vadd.f32 %v384, %v385
        %v387 = vmul.f32 %v386, %v189
        %v388 = vsub.f32 %v378, %v387
        %v389 = vmul.f32 %v388, %v388
        %v390 = vrot.slane %v389, 4
        %v391 = vadd.f32 %v389, %v390
        %v392 = vrot.slane %v391, 2
        %v393 = vadd.f32 %v391, %v392
        %v394 = vrot.slane %v393, 1
        %v395 = vadd.f32 %v393, %v394
        %v396 = vmul.f32 %v395, %v189
        %v397 = vadd.f32 %v396, 1e-05
        %v398 = vrsqrt.pop %v397
        %v399 = vmul.f32 %v388, %v398
        %v400 = vlaneseq
        %v401 = vshrl.u32 %v400, 7
        %v402 = vsub.s32 1, %v401
        %v403 = vrot.slane %v181, %v402
        %v404 = vmul.f32 %v399, %v403
        %v405 = vlaneseq
        %v406 = vshrl.u32 %v405, 7
        %v407 = vsub.s32 2, %v406
        %v408 = vrot.slane %v181, %v407
        %v409 = vadd.f32 %v404, %v408
        %v410 = vmax.f32 %v409, 0.0
        %s411 = scalar_lea.vmem [#allocation2], 256
        %v412 = vld [vmem:[%s411] sm:$0xff]
        %v413 = vld [vmem:[%s411 + $0x8] sm:$0xff]
        %v414 = vld [vmem:[%s411 + $0x10] sm:$0xff]
        %v415 = vld [vmem:[%s411 + $0x18] sm:$0xff]
        %v416 = vld [vmem:[%s411 + $0x20] sm:$0xff]
        %v417 = vld [vmem:[%s411 + $0x28] sm:$0xff]
        %v418 = vld [vmem:[%s411 + $0x30] sm:$0xff]
        %v419 = vld [vmem:[%s411 + $0x38] sm:$0xff]
        %v420 = vld [vmem:[%s411 + $0x40] sm:$0xff]
        %v421 = vld [vmem:[%s411 + $0x48] sm:$0xff]
        %v422 = vld [vmem:[%s411 + $0x50] sm:$0xff]
        %v423 = vld [vmem:[%s411 + $0x58] sm:$0xff]
        %v424 = vld [vmem:[%s411 + $0x60] sm:$0xff]
        %v425 = vld [vmem:[%s411 + $0x68] sm:$0xff]
        %v426 = vld [vmem:[%s411 + $0x70] sm:$0xff]
        %v427 = vld [vmem:[%s411 + $0x78] sm:$0xff]
        %v428 = vlaneseq
        %v429 = vshrl.u32 %v428, 7
        %v430 = vsub.s32 3, %v429
        %v431 = vrot.slane %v181, %v430
        %432 = vmatprep.subr.mxu0 0.0
        %433 = vmatpush1.msra.mxu0 %v412
        %434 = vmatprep.subr.mxu0 0.0
        %435 = vmatpush1.msra.mxu0 %v413
        %436 = vmatprep.subr.mxu0 0.0
        %437 = vmatpush1.msra.mxu0 %v414
        %438 = vmatprep.subr.mxu0 0.0
        %439 = vmatpush1.msra.mxu0 %v415
        %440 = vmatprep.subr.mxu0 0.0
        %441 = vmatpush1.msra.mxu0 %v416
        %442 = vmatprep.subr.mxu0 0.0
        %443 = vmatpush1.msra.mxu0 %v417
        %444 = vmatprep.subr.mxu0 0.0
        %445 = vmatpush1.msra.mxu0 %v418
        %446 = vmatprep.subr.mxu0 0.0
        %447 = vmatpush1.msra.mxu0 %v419
        %448 = vmatprep.subr.mxu0 0.0
        %449 = vmatpush1.msra.mxu0 %v420
        %450 = vmatprep.subr.mxu0 0.0
        %451 = vmatpush1.msra.mxu0 %v421
        %452 = vmatprep.subr.mxu0 0.0
        %453 = vmatpush1.msra.mxu0 %v422
        %454 = vmatprep.subr.mxu0 0.0
        %455 = vmatpush1.msra.mxu0 %v423
        %456 = vmatprep.subr.mxu0 0.0
        %457 = vmatpush1.msra.mxu0 %v424
        %458 = vmatprep.subr.mxu0 0.0
        %459 = vmatpush1.msra.mxu0 %v425
        %460 = vmatprep.subr.mxu0 0.0
        %461 = vmatpush1.msra.mxu0 %v426
        %462 = vmatprep.subr.mxu0 0.0
        %463 = vmatpush1.msra.mxu0 %v427
        %464 = vmatprep.subr.mxu0 0.0
        %465 = vmatpush1.msra.mxu0 0.0
        %466 = vmatprep.subr.mxu0 0.0
        %467 = vmatpush1.msra.mxu0 0.0
        %468 = vmatprep.subr.mxu0 0.0
        %469 = vmatpush1.msra.mxu0 0.0
        %470 = vmatprep.subr.mxu0 0.0
        %471 = vmatpush1.msra.mxu0 0.0
        %472 = vmatprep.subr.mxu0 0.0
        %473 = vmatpush1.msra.mxu0 0.0
        %474 = vmatprep.subr.mxu0 0.0
        %475 = vmatpush1.msra.mxu0 0.0
        %476 = vmatprep.subr.mxu0 0.0
        %477 = vmatpush1.msra.mxu0 0.0
        %478 = vmatprep.subr.mxu0 0.0
        %479 = vmatpush1.msra.mxu0 0.0
        %480 = vmatprep.subr.mxu0 0.0
        %481 = vmatpush1.msra.mxu0 0.0
        %482 = vmatprep.subr.mxu0 0.0
        %483 = vmatpush1.msra.mxu0 0.0
        %484 = vmatprep.subr.mxu0 0.0
        %485 = vmatpush1.msra.mxu0 0.0
        %486 = vmatprep.subr.mxu0 0.0
        %487 = vmatpush1.msra.mxu0 0.0
        %488 = vmatprep.subr.mxu0 0.0
        %489 = vmatpush1.msra.mxu0 0.0
        %490 = vmatprep.subr.mxu0 0.0
        %491 = vmatpush1.msra.mxu0 0.0
        %492 = vmatprep.subr.mxu0 0.0
        %493 = vmatpush1.msra.mxu0 0.0
        %494 = vmatprep.subr.mxu0 0.0
        %495 = vmatpush1.msra.mxu0 0.0
        %496 = vmatprep.mubr.f32.mxu0 0.0
        %497 = vmatmul.mubr.f32.gmra.mrb[0].mxu0 %v410
        %v498 = vpop.f32.mrb[0].mxu0
        %v499 = vadd.f32 %v431, %v498
        %v500 = vpop.f32.mrb[0].mxu0
        %501 = vdwg.mxu0
        %502 = vst [vmem:[%s180] sm:$0xff] %v499
        %p503 = scmp.lt.s32.totalorder %s15, 3
        %s504 = scalar_select %p503, %s15, 3
        %s505 = smul.addr %s504, 8
        %s506 = scalar_lea.vmem %s3, %s505
        // Predicated region
        $region37: #{dqn_forward_packed.1} parent=31 // pred_check
          %p507 = pneg %p101
        $region38: #{dqn_forward_packed.1} parent=31 // pred_check_branch
          %509 = sbr.rel (%p507) target = $region40
        $region39: #{dqn_forward_packed.1} parent=31 // pred_region
          _
        $region40: #{dqn_forward_packed.1} parent=31 // pred_fallthru
          _
      $region32: #{dqn_forward_packed.1} parent=5 // pred_fallthru
        _
      %p510 = scmp.le.s32.totalorder 2, %s10
      // Predicated region
      $region41: #{dqn_forward_packed.1} parent=5 // pred_check
        %p511 = pneg %p510
      $region42: #{dqn_forward_packed.1} parent=5 // pred_check_branch
        %513 = sbr.rel (%p511) target = $region44
      $region43: #{dqn_forward_packed.1} parent=5 // pred_region
        %s514 = ssub.s32 %s10, 2
        // Predicated region
        $region45: #{dqn_forward_packed.1} parent=43 // pred_check
          %p515 = pneg %p107
        $region46: #{dqn_forward_packed.1} parent=43 // pred_check_branch
          %517 = sbr.rel (%p515) target = $region48
        $region47: #{dqn_forward_packed.1} parent=43 // pred_region
          %p518 = scmp.lt.s32.totalorder %s16, 3
          %s519 = scalar_select %p518, %s16, 3
          %s520 = smul.addr %s519, 8
          %s521 = scalar_lea.vmem %s3, %s520
        $region48: #{dqn_forward_packed.1} parent=43 // pred_fallthru
          _
      $region44: #{dqn_forward_packed.1} parent=5 // pred_fallthru
        _
    $region6: #{dqn_forward_packed.1} parent=1 // loop_footer
      %s14 = sadd.s32 1, %s10
    $region7: #{dqn_forward_packed.1} parent=1 // loop_footer_branch
      %9 = sbr.rel target = $region3
    $region8: #{dqn_forward_packed.1} parent=1 // loop_exit
      _
    %522 = vsyncpa [#allocation3], 1
    %s523 = scalar_lea.sflag [#allocation3], 1
    %524 = vsyncpa %s523, 1

</llo_original>
